<compile_context>
chip_gen: v7x
topology: tpu7x:2x2x1
jax: 0.10.0
libtpu: 0.0.40
codegen_flags: <defaults>
</compile_context>

<pallas_src>
import jax
import jax.numpy as jnp
from jax.experimental import pallas as pl
from jax.experimental.pallas import tpu as pltpu


def _scse_kernel(x_ref, s_ref, ws_ref, bs_ref, out_ref):
    # x_ref   : (1, C, T)      feature-map tile
    # s_ref   : (1, C, 1)      precomputed cSE channel gate (post-sigmoid)
    # ws_ref  : (C, 1)         sSE 1x1 conv weight (as a column)
    # bs_ref  : (1, 1)         sSE bias
    # out_ref : (1, 2, C, T)   [0] = x * cSE(x), [1] = x * sSE(x)
    x = x_ref[0]                                   # (C, T)
    s = s_ref[0]                                   # (C, 1)

    # sSE spatial gate: broadcast-mul + sublane reduce (VPU + XLU, no MXU).
    xw = x.astype(jnp.float32) * ws_ref[...].astype(jnp.float32)      # (C, T)
    sp = jnp.sum(xw, axis=0, keepdims=True) + bs_ref[...].astype(jnp.float32)
    sp = jax.nn.sigmoid(sp)                        # (1, T)

    out_ref[0, 0] = (x * s).astype(out_ref.dtype)   # channel-excited half
    out_ref[0, 1] = (x * sp).astype(out_ref.dtype)  # spatially-excited half


def _pick_tile_hw(C, hw, itemsize, max_tile_hw, vmem_budget_bytes=12 << 20):
    """Largest lane-dense tile that keeps the double-buffered working set small."""
    hw128 = ((hw + 127) // 128) * 128
    # Per grid step: x tile (C*T) + output tile (2*C*T), each double-buffered.
    per_lane_bytes = 6 * C * itemsize
    t = vmem_budget_bytes // per_lane_bytes
    t = min(t, max_tile_hw, hw128)
    t = max(128, (t // 128) * 128)
    return t


def scse_cat(x, w1, b1, w2, b2, ws, bs, *, max_tile_hw=2048):
    """SCSEModule(mode='cat') forward.

    x : (N, C, H, W)
    w1: (mid, C), b1: (mid,)   -- cSE Conv2d(C, mid, 1)
    w2: (C, mid), b2: (C,)     -- cSE Conv2d(mid, C, 1)
    ws: (1, C),   bs: (1,)     -- sSE Conv2d(C, 1, 1)
    returns (N, 2*C, H, W)
    """
    N, C, H, W = x.shape
    HW = H * W

    # ---- cSE squeeze path hoisted out of the spatial tile loop (needs full HW).
    avg = jnp.mean(x, axis=(2, 3))                                   # (N, C)
    h = jnp.maximum(avg @ w1.T + b1[None, :], 0.0)                   # (N, mid)
    s = jax.nn.sigmoid(h @ w2.T + b2[None, :]).astype(x.dtype)       # (N, C)
    s3 = s[:, :, None]                                               # (N, C, 1)

    # ---- lane-dense spatial tiling.
    tile_hw = _pick_tile_hw(C, HW, x.dtype.itemsize, max_tile_hw)
    hw_pad = ((HW + tile_hw - 1) // tile_hw) * tile_hw
    n_t = hw_pad // tile_hw

    xf = x.reshape(N, C, HW)
    if hw_pad != HW:
        xf = jnp.pad(xf, ((0, 0), (0, 0), (0, hw_pad - HW)))

    ws_col = ws.reshape(C, 1).astype(jnp.float32)
    bs2 = bs.reshape(1, 1).astype(jnp.float32)

    out = pl.pallas_call(
        _scse_kernel,
        out_shape=jax.ShapeDtypeStruct((N, 2, C, hw_pad), x.dtype),
        grid=(N, n_t),
        in_specs=[
            pl.BlockSpec((1, C, tile_hw), lambda n, t: (n, 0, t)),   # x tile
            pl.BlockSpec((1, C, 1), lambda n, t: (n, 0, 0)),         # cSE gate
            pl.BlockSpec((C, 1), lambda n, t: (0, 0)),               # ws column
            pl.BlockSpec((1, 1), lambda n, t: (0, 0)),               # bs
        ],
        out_specs=pl.BlockSpec((1, 2, C, tile_hw), lambda n, t: (n, 0, 0, t)),
        compiler_params=pltpu.CompilerParams(
            dimension_semantics=("parallel", "parallel")),
    )(xf, s3, ws_col, bs2)

    if hw_pad != HW:
        out = out[:, :, :, :HW]
    return out.reshape(N, 2 * C, H, W)


def _reference(x, w1, b1, w2, b2, ws, bs):
    """Pure-JAX reference matching the PyTorch module (mode='cat')."""
    avg = jnp.mean(x, axis=(2, 3), keepdims=True)                      # (N,C,1,1)
    h = jnp.einsum("mc,nchw->nmhw", w1, avg) + b1[None, :, None, None]
    h = jnp.maximum(h, 0.0)
    s = jnp.einsum("cm,nmhw->nchw", w2, h) + b2[None, :, None, None]
    s = jax.nn.sigmoid(s)                                              # (N,C,1,1)
    sp = jnp.einsum("oc,nchw->nohw", ws, x) + bs[None, :, None, None]
    sp = jax.nn.sigmoid(sp)                                            # (N,1,H,W)
    return jnp.concatenate([x * s, x * sp], axis=1)


if __name__ == "__main__":
    # SCSEModule(in_channels=32, mode='cat', reduction=16)  ->  mid = 2
    N, C, H, W = 2, 32, 16, 16
    reduction = 16
    mid = C // reduction

    key = jax.random.PRNGKey(0)
    kx, k1, k2, k3, k4, k5, k6 = jax.random.split(key, 7)

    x = jax.random.normal(kx, (N, C, H, W), dtype=jnp.float32)

    # Conv2d(C, mid, 1): weight (mid, C, 1, 1) -> (mid, C); bias (mid,)
    w1 = jax.random.normal(k1, (mid, C), dtype=jnp.float32) * 0.2
    b1 = jax.random.normal(k2, (mid,), dtype=jnp.float32) * 0.1
    # Conv2d(mid, C, 1): weight (C, mid, 1, 1) -> (C, mid); bias (C,)
    w2 = jax.random.normal(k3, (C, mid), dtype=jnp.float32) * 0.2
    b2 = jax.random.normal(k4, (C,), dtype=jnp.float32) * 0.1
    # sSE Conv2d(C, 1, 1): weight (1, C, 1, 1) -> (1, C); bias (1,)
    ws = jax.random.normal(k5, (1, C), dtype=jnp.float32) * 0.2
    bs = jax.random.normal(k6, (1,), dtype=jnp.float32) * 0.1

    # max_tile_hw=128 forces multiple spatial tiles (HW=256 -> grid=(2, 2))
    # so the tiled path is actually exercised at this small test size.
    out = scse_cat(x, w1, b1, w2, b2, ws, bs, max_tile_hw=128)
    out = jax.block_until_ready(out)

    ref = _reference(x, w1, b1, w2, b2, ws, bs)
    assert out.shape == (N, 2 * C, H, W)
    assert jnp.allclose(out, ref, atol=1e-5, rtol=1e-5), "mismatch vs reference"

    print("KERNEL_OK")
</pallas_src>

<mosaic_0001>
module attributes {stable_mosaic.version = 11 : i64} {
  func.func @_scse_kernel(%arg0: i32, %arg1: i32, %arg2: memref<1x32x128xf32, #tpu.memory_space<vmem>>, %arg3: memref<1x32x1xf32, #tpu.memory_space<vmem>>, %arg4: memref<32x1xf32, #tpu.memory_space<vmem>>, %arg5: memref<1x1xf32, #tpu.memory_space<vmem>>, %arg6: memref<1x2x32x128xf32, #tpu.memory_space<vmem>>) attributes {dimension_semantics = [#tpu.dimension_semantics<parallel>, #tpu.dimension_semantics<parallel>], iteration_bounds = array<i64: 2, 2>, scalar_prefetch = 0 : i64, scratch_operands = 0 : i64, tpu.core_type = #tpu.core_type<tc>, window_params = [{transform_indices = @transform_0, window_bounds = array<i64: 1, 32, 128>}, {transform_indices = @transform_1, window_bounds = array<i64: 1, 32, 1>}, {pipeline_mode = #tpu.pipeline_mode<synchronous>, transform_indices = @transform_2, window_bounds = array<i64: 32, 1>}, {pipeline_mode = #tpu.pipeline_mode<synchronous>, transform_indices = @transform_3, window_bounds = array<i64: 1, 1>}, {transform_indices = @transform_4, window_bounds = array<i64: 1, 2, 32, 128>}]} {
    %c0 = arith.constant 0 : index
    %c0_0 = arith.constant 0 : index
    %c0_1 = arith.constant 0 : index
    %0 = vector.load %arg2[%c0, %c0_0, %c0_1] : memref<1x32x128xf32, #tpu.memory_space<vmem>>, vector<1x32x128xf32>
    %1 = vector.shape_cast %0 : vector<1x32x128xf32> to vector<32x128xf32>
    %c0_2 = arith.constant 0 : index
    %c0_3 = arith.constant 0 : index
    %c0_4 = arith.constant 0 : index
    %2 = vector.load %arg3[%c0_2, %c0_3, %c0_4] : memref<1x32x1xf32, #tpu.memory_space<vmem>>, vector<1x32x1xf32>
    %3 = vector.shape_cast %2 : vector<1x32x1xf32> to vector<32x1xf32>
    %c0_5 = arith.constant 0 : index
    %c0_6 = arith.constant 0 : index
    %4 = vector.load %arg4[%c0_5, %c0_6] : memref<32x1xf32, #tpu.memory_space<vmem>>, vector<32x1xf32>
    %5 = vector.broadcast %4 : vector<32x1xf32> to vector<32x128xf32>
    %6 = arith.mulf %1, %5 : vector<32x128xf32>
    %cst = arith.constant dense<0.000000e+00> : vector<128xf32>
    %7 = vector.multi_reduction <add>, %6, %cst [0] : vector<32x128xf32> to vector<128xf32>
    %8 = vector.shape_cast %7 : vector<128xf32> to vector<1x128xf32>
    %c0_7 = arith.constant 0 : index
    %c0_8 = arith.constant 0 : index
    %9 = vector.load %arg5[%c0_7, %c0_8] : memref<1x1xf32, #tpu.memory_space<vmem>>, vector<1x1xf32>
    %10 = vector.broadcast %9 : vector<1x1xf32> to vector<1x128xf32>
    %11 = arith.addf %8, %10 : vector<1x128xf32>
    %12 = arith.negf %11 : vector<1x128xf32>
    %13 = math.exp %12 : vector<1x128xf32>
    %cst_9 = arith.constant 1.000000e+00 : f32
    %14 = vector.broadcast %cst_9 : f32 to vector<1x128xf32>
    %15 = arith.addf %14, %13 : vector<1x128xf32>
    %16 = arith.divf %14, %15 : vector<1x128xf32>
    %17 = vector.broadcast %3 : vector<32x1xf32> to vector<32x128xf32>
    %18 = arith.mulf %1, %17 : vector<32x128xf32>
    %c0_10 = arith.constant 0 : index
    %c0_11 = arith.constant 0 : index
    %c0_12 = arith.constant 0 : index
    %c0_13 = arith.constant 0 : index
    %19 = vector.load %arg6[%c0_10, %c0_11, %c0_12, %c0_13] : memref<1x2x32x128xf32, #tpu.memory_space<vmem>>, vector<1x1x32x128xf32>
    %20 = vector.shape_cast %19 : vector<1x1x32x128xf32> to vector<32x128xf32>
    %21 = vector.shape_cast %18 : vector<32x128xf32> to vector<1x1x32x128xf32>
    tpu.vector_store %arg6[%c0_10, %c0_11, %c0_12, %c0_13], %21 {strides = array<i32>} : memref<1x2x32x128xf32, #tpu.memory_space<vmem>>, vector<1x1x32x128xf32>,
    %22 = vector.broadcast %16 : vector<1x128xf32> to vector<32x128xf32>
    %23 = arith.mulf %1, %22 : vector<32x128xf32>
    %c0_14 = arith.constant 0 : index
    %c1 = arith.constant 1 : index
    %c0_15 = arith.constant 0 : index
    %c0_16 = arith.constant 0 : index
    %24 = vector.load %arg6[%c0_14, %c1, %c0_15, %c0_16] : memref<1x2x32x128xf32, #tpu.memory_space<vmem>>, vector<1x1x32x128xf32>
    %25 = vector.shape_cast %24 : vector<1x1x32x128xf32> to vector<32x128xf32>
    %26 = vector.shape_cast %23 : vector<32x128xf32> to vector<1x1x32x128xf32>
    tpu.vector_store %arg6[%c0_14, %c1, %c0_15, %c0_16], %26 {strides = array<i32>} : memref<1x2x32x128xf32, #tpu.memory_space<vmem>>, vector<1x1x32x128xf32>,
    return
  }
  func.func @transform_0(%arg0: i32, %arg1: i32) -> (i32, i32, i32) {
    %c0_i32 = arith.constant 0 : i32
    %c0_i32_0 = arith.constant 0 : i32
    return %arg0, %c0_i32, %arg1 : i32, i32, i32
  }
  func.func @transform_1(%arg0: i32, %arg1: i32) -> (i32, i32, i32) {
    %c0_i32 = arith.constant 0 : i32
    %c0_i32_0 = arith.constant 0 : i32
    %c0_i32_1 = arith.constant 0 : i32
    return %arg0, %c0_i32, %c0_i32_0 : i32, i32, i32
  }
  func.func @transform_2(%arg0: i32, %arg1: i32) -> (i32, i32) {
    %c0_i32 = arith.constant 0 : i32
    %c0_i32_0 = arith.constant 0 : i32
    %c0_i32_1 = arith.constant 0 : i32
    return %c0_i32, %c0_i32_0 : i32, i32
  }
  func.func @transform_3(%arg0: i32, %arg1: i32) -> (i32, i32) {
    %c0_i32 = arith.constant 0 : i32
    %c0_i32_0 = arith.constant 0 : i32
    %c0_i32_1 = arith.constant 0 : i32
    return %c0_i32, %c0_i32_0 : i32, i32
  }
  func.func @transform_4(%arg0: i32, %arg1: i32) -> (i32, i32, i32, i32) {
    %c0_i32 = arith.constant 0 : i32
    %c0_i32_0 = arith.constant 0 : i32
    %c0_i32_1 = arith.constant 0 : i32
    return %arg0, %c0_i32, %c0_i32_0, %arg1 : i32, i32, i32, i32
  }
}

</mosaic_0001>

<llo_original>
// kernel: tpu_custom_call.1
$region0: #{tpu_custom_call.1}
  #allocation0 [shape = 'u32[]', space=smem, size = 0x4, offset = 0x4, fixed_abs, tag = 'smem constant byte address 0x4 - core index']
  #allocation1 [shape = 'u32[144,128]{1,0:T(1,128)}', space=vmem, size = 0x12000, scoped, tag = 'internal scratch']
  #allocation2 [shape = 'f32[1,1]{1,0:T(1,128)S(1)}', space=vmem, size = 0x200, scoped, tag = 'scoped memory for tpu_custom_call.1']
  %s0 = inlined_call_operand.hbm [shape: f32[2,32,256], index: 0, kind: input, shape index: {}]
  %s1 = inlined_call_operand.vmem [shape: f32[2,32,1], index: 1, kind: input, shape index: {}]
  %s2 = inlined_call_operand.vmem [shape: f32[32,1], index: 2, kind: input, shape index: {}]
  %s3 = inlined_call_operand.<no memory space> [shape: f32[1,1], index: 3, kind: input, shape index: {}]
  %s4 = inlined_call_operand.hbm [shape: f32[2,2,32,256], index: 4, kind: output, shape index: {}]
  %s5 = sld [smem:[#allocation0]]
  $region53: #{tpu_custom_call.1} parent=0
    _
  %s7 = ssub.s32 1, %s5
  %s8 = scalar_select 0, %s7, %s5
  %v9 = vstv %s3
  %10 = vst [vmem:[#allocation2] sm:$0x1] %v9
  $region1: #{tpu_custom_call.1} parent=0
    #allocation3 [shape = 'u8[32768]{0}', space=vmem, size = 0x8000, scoped, tag = 'input window, operand 0']
    #allocation4 [shape = 's32[2]{0}', space=sflag, size = 0x8, scoped, tag = 'scoped memory for tpu_custom_call.1']
    #allocation5 [shape = 's32[2]{0}', space=sflag, size = 0x8, scoped, tag = 'scoped memory for tpu_custom_call.1']
    #allocation6 [shape = 'u8[65536]{0}', space=vmem, size = 0x10000, scoped, tag = 'output window, operand 0']
    %11 = vsyncpa [#allocation4], 0
    %s12 = scalar_lea.sflag [#allocation4], 1
    %13 = vsyncpa %s12, 0
    %14 = vsyncpa [#allocation5], 0
    %s15 = scalar_lea.sflag [#allocation5], 1
    %16 = vsyncpa %s15, 0
    loop: start=0, step=1, limit=6
    $region2: #{tpu_custom_call.1} parent=1 // loop_pre_header
      _
    $region3: #{tpu_custom_call.1} parent=1 // loop_header
      %s18 = sphi 0, %s22
      %p19 = scmp.ge.s32.totalorder %s18, 6
      %s25 = sphi 0, %s37
      %s26 = sphi 0, %s33
      %s27 = sphi 0, %s25
      %s28 = sphi 0, %s26
      %s29 = sphi 0, %s27
      %s30 = sphi 0, %s28
      %s42 = sphi 0, %s44
      %s45 = sphi 0, %s42
      %s46 = sphi 0, %s45
      %s62 = sphi 0, %s46
      %s68 = sphi 0, %s70
      %s71 = sphi 0, %s68
      %s72 = sphi 0, %s71
      %s88 = sphi 0, %s72
      %s92 = sphi 0, %s92
      %s94 = sphi 0, %s92
      %s95 = sphi 0, %s94
      %s109 = sphi 0, %s95
      %s113 = sphi 0, %s113
      %s115 = sphi 0, %s113
      %s116 = sphi 0, %s115
      %s130 = sphi 0, %s116
      %s138 = sphi 0, %s140
      %s141 = sphi 0, %s138
      %s142 = sphi 0, %s141
      %s158 = sphi 0, %s142
    $region4: #{tpu_custom_call.1} parent=1 // loop_header_branch
      %21 = sbr.rel (%p19) target = $region8
    $region5: #{tpu_custom_call.1} parent=1 // loop_body
      %s23 = ssub.s32 %s18, 1
      %s24 = ssub.s32 %s18, 2
      %s31 = sadd.s32 1, %s26
      %p32 = scmp.ge.s32.totalorder %s31, 2
      %s33 = scalar_select %p32, 0, %s31
      %s34 = sadd.s32 1, %s25
      %s35 = scalar_select %p32, %s34, %s25
      %p36 = scmp.ge.s32.totalorder %s35, 2
      %s37 = scalar_select %p36, 0, %s35
      %s38 = ssub.s32 %s25, %s37
      %s39 = ssub.s32 %s26, %s33
      %s40 = sor.u32 %s38, %s39
      %p41 = scmp.eq.s32.totalorder %s40, 0
      %s43 = sadd.s32 %s42, 1
      %s44 = scalar_select %p41, %s42, %s43
      %p47 = pneg %p41
      %p48 = scmp.eq.s32.totalorder %s18, 3
      %p49 = por %p47, %p48
      %p50 = scmp.ne.s32.totalorder %s42, %s45
      %p51 = scmp.eq.s32.totalorder %s18, 0
      %p52 = por %p50, %p51
      %p53 = scmp.ne.s32.totalorder %s42, %s45
      %p54 = scmp.eq.s32.totalorder %s23, 3
      %p55 = por %p53, %p54
      %p56 = scmp.ne.s32.totalorder %s45, %s46
      %p57 = scmp.eq.s32.totalorder %s23, 0
      %p58 = por %p56, %p57
      %p59 = scmp.ne.s32.totalorder %s45, %s46
      %p60 = scmp.eq.s32.totalorder %s24, 3
      %p61 = por %p59, %p60
      %p63 = scmp.ne.s32.totalorder %s46, %s62
      %p64 = scmp.eq.s32.totalorder %s24, 0
      %p65 = por %p63, %p64
      %s66 = ssub.s32 %s25, %s37
      %p67 = scmp.eq.s32.totalorder %s66, 0
      %s69 = sadd.s32 %s68, 1
      %s70 = scalar_select %p67, %s68, %s69
      %p73 = pneg %p67
      %p74 = scmp.eq.s32.totalorder %s18, 3
      %p75 = por %p73, %p74
      %p76 = scmp.ne.s32.totalorder %s68, %s71
      %p77 = scmp.eq.s32.totalorder %s18, 0
      %p78 = por %p76, %p77
      %p79 = scmp.ne.s32.totalorder %s68, %s71
      %p80 = scmp.eq.s32.totalorder %s23, 3
      %p81 = por %p79, %p80
      %p82 = scmp.ne.s32.totalorder %s71, %s72
      %p83 = scmp.eq.s32.totalorder %s23, 0
      %p84 = por %p82, %p83
      %p85 = scmp.ne.s32.totalorder %s71, %s72
      %p86 = scmp.eq.s32.totalorder %s24, 3
      %p87 = por %p85, %p86
      %p89 = scmp.ne.s32.totalorder %s72, %s88
      %p90 = scmp.eq.s32.totalorder %s24, 0
      %p91 = por %p89, %p90
      %s93 = sadd.s32 %s92, 1
      %p96 = scmp.eq.s32.totalorder %s18, 3
      %p97 = scmp.ne.s32.totalorder %s92, %s94
      %p98 = scmp.eq.s32.totalorder %s18, 0
      %p99 = por %p97, %p98
      %p100 = scmp.ne.s32.totalorder %s92, %s94
      %p101 = scmp.eq.s32.totalorder %s23, 3
      %p102 = por %p100, %p101
      %p103 = scmp.ne.s32.totalorder %s94, %s95
      %p104 = scmp.eq.s32.totalorder %s23, 0
      %p105 = por %p103, %p104
      %p106 = scmp.ne.s32.totalorder %s94, %s95
      %p107 = scmp.eq.s32.totalorder %s24, 3
      %p108 = por %p106, %p107
      %p110 = scmp.ne.s32.totalorder %s95, %s109
      %p111 = scmp.eq.s32.totalorder %s24, 0
      %p112 = por %p110, %p111
      %s114 = sadd.s32 %s113, 1
      %p117 = scmp.eq.s32.totalorder %s18, 3
      %p118 = scmp.ne.s32.totalorder %s113, %s115
      %p119 = scmp.eq.s32.totalorder %s18, 0
      %p120 = por %p118, %p119
      %p121 = scmp.ne.s32.totalorder %s113, %s115
      %p122 = scmp.eq.s32.totalorder %s23, 3
      %p123 = por %p121, %p122
      %p124 = scmp.ne.s32.totalorder %s115, %s116
      %p125 = scmp.eq.s32.totalorder %s23, 0
      %p126 = por %p124, %p125
      %p127 = scmp.ne.s32.totalorder %s115, %s116
      %p128 = scmp.eq.s32.totalorder %s24, 3
      %p129 = por %p127, %p128
      %p131 = scmp.ne.s32.totalorder %s116, %s130
      %p132 = scmp.eq.s32.totalorder %s24, 0
      %p133 = por %p131, %p132
      %s134 = ssub.s32 %s25, %s37
      %s135 = ssub.s32 %s26, %s33
      %s136 = sor.u32 %s134, %s135
      %p137 = scmp.eq.s32.totalorder %s136, 0
      %s139 = sadd.s32 %s138, 1
      %s140 = scalar_select %p137, %s138, %s139
      %p143 = pneg %p137
      %p144 = scmp.eq.s32.totalorder %s18, 3
      %p145 = por %p143, %p144
      %p146 = scmp.ne.s32.totalorder %s138, %s141
      %p147 = scmp.eq.s32.totalorder %s18, 0
      %p148 = por %p146, %p147
      %p149 = scmp.ne.s32.totalorder %s138, %s141
      %p150 = scmp.eq.s32.totalorder %s23, 3
      %p151 = por %p149, %p150
      %p152 = scmp.ne.s32.totalorder %s141, %s142
      %p153 = scmp.eq.s32.totalorder %s23, 0
      %p154 = por %p152, %p153
      %p155 = scmp.ne.s32.totalorder %s141, %s142
      %p156 = scmp.eq.s32.totalorder %s24, 3
      %p157 = por %p155, %p156
      %p159 = scmp.ne.s32.totalorder %s142, %s158
      %p160 = scmp.eq.s32.totalorder %s24, 0
      %p161 = por %p159, %p160
      %p162 = scmp.le.s32.totalorder 1, %s18
      %p163 = scmp.lt.s32.totalorder %s18, 5
      %p164 = pnand %p162, %p163
      %p165 = pneg %p164
      // Predicated region
      $region9: #{tpu_custom_call.1} parent=5 // pred_check
        _
      $region10: #{tpu_custom_call.1} parent=5 // pred_check_branch
        %167 = sbr.rel (%p164) target = $region12
      $region11: #{tpu_custom_call.1} parent=5 // pred_region
        %s168 = ssub.s32 %s18, 1
        // Predicated region
        $region13: #{tpu_custom_call.1} parent=11 // pred_check
          %p169 = pneg %p105
        $region14: #{tpu_custom_call.1} parent=11 // pred_check_branch
          %171 = sbr.rel (%p169) target = $region16
        $region15: #{tpu_custom_call.1} parent=11 // pred_region
          _
        $region16: #{tpu_custom_call.1} parent=11 // pred_fallthru
          _
        // Predicated region
        $region17: #{tpu_custom_call.1} parent=11 // pred_check
          %p172 = pneg %p126
        $region18: #{tpu_custom_call.1} parent=11 // pred_check_branch
          %174 = sbr.rel (%p172) target = $region20
        $region19: #{tpu_custom_call.1} parent=11 // pred_region
          _
        $region20: #{tpu_custom_call.1} parent=11 // pred_fallthru
          _
      $region12: #{tpu_custom_call.1} parent=5 // pred_fallthru
        _
      %p175 = scmp.lt.s32.totalorder %s18, 4
      // Predicated region
      $region21: #{tpu_custom_call.1} parent=5 // pred_check
        %p176 = pneg %p175
      $region22: #{tpu_custom_call.1} parent=5 // pred_check_branch
        %178 = sbr.rel (%p176) target = $region24
      $region23: #{tpu_custom_call.1} parent=5 // pred_region
        // Predicated region
        $region25: #{tpu_custom_call.1} parent=23 // pred_check
          %p179 = pneg %p52
        $region26: #{tpu_custom_call.1} parent=23 // pred_check_branch
          %181 = sbr.rel (%p179) target = $region28
        $region27: #{tpu_custom_call.1} parent=23 // pred_region
          %s182 = sand.u32 %s42, 1
          %s183 = scalar_lea.sflag [#allocation4], %s182
          %s184 = sand.u32 %s42, 1
          %s185 = smul.addr %s184, 32
          %s186 = scalar_lea.vmem [#allocation3], %s185
          %s188 = ssub.s32 512, 512
          %189 = vsyncadd %s183, %s188
          %s190 = smul.addr %s25, 8
          %s191 = sadd.s32 %s26, %s190
          %s192 = smul.addr %s191, 128
          %s193 = scalar_lea.hbm %s0, %s192
          %s194 = sshll.u32 %s186, 4
          %s195 = int_to_ptr.vmem [resolvable:$true] %s194
          %200 = dma.hbm_to_vmem [thread:$0]  %s193, 512, %s195, %s183, 256, 128, 8
        $region28: #{tpu_custom_call.1} parent=23 // pred_fallthru
          _
        // Predicated region
        $region29: #{tpu_custom_call.1} parent=23 // pred_check
          %p201 = pneg %p78
        $region30: #{tpu_custom_call.1} parent=23 // pred_check_branch
          %203 = sbr.rel (%p201) target = $region32
        $region31: #{tpu_custom_call.1} parent=23 // pred_region
          %p204 = scmp.lt.s32.totalorder %s25, 1
          %s205 = scalar_select %p204, %s25, 1
          %s206 = smul.addr %s205, 4
          %s207 = smul.addr %s206, 8
          %s208 = scalar_lea.vmem %s1, %s207
        $region32: #{tpu_custom_call.1} parent=23 // pred_fallthru
          _
      $region24: #{tpu_custom_call.1} parent=5 // pred_fallthru
        _
      %p209 = scmp.le.s32.totalorder 1, %s18
      %p210 = scmp.lt.s32.totalorder %s18, 5
      %p211 = pnand %p209, %p210
      %p212 = pneg %p211
      // Predicated region
      $region33: #{tpu_custom_call.1} parent=5 // pred_check
        _
      $region34: #{tpu_custom_call.1} parent=5 // pred_check_branch
        %214 = sbr.rel (%p211) target = $region36
      $region35: #{tpu_custom_call.1} parent=5 // pred_region
        %s215 = ssub.s32 %s18, 1
        %s216 = sand.u32 %s45, 1
        %s217 = scalar_lea.sflag [#allocation4], %s216
        %s218 = sand.u32 %s45, 1
        %s219 = smul.addr %s218, 32
        %s220 = scalar_lea.vmem [#allocation3], %s219
        // Predicated region
        $region37: #{tpu_custom_call.1} parent=35 // pred_check
          %p221 = pneg %p58
        $region38: #{tpu_custom_call.1} parent=35 // pred_check_branch
          %223 = sbr.rel (%p221) target = $region40
        $region39: #{tpu_custom_call.1} parent=35 // pred_region
          %224 = dma.done %s217, 512
        $region40: #{tpu_custom_call.1} parent=35 // pred_fallthru
          _
        %s225 = sand.u32 %s45, 1
        %s226 = scalar_lea.sflag [#allocation4], %s225
        %s227 = sand.u32 %s45, 1
        %s228 = smul.addr %s227, 32
        %s229 = scalar_lea.vmem [#allocation3], %s228
        %p230 = pneg %p58
        %p231 = pneg %p55
        %p232 = scmp.lt.s32.totalorder %s27, 1
        %s233 = scalar_select %p232, %s27, 1
        %s234 = smul.addr %s233, 4
        %s235 = smul.addr %s234, 8
        %s236 = scalar_lea.vmem %s1, %s235
        %p237 = pneg %p84
        %p238 = pneg %p81
        %p239 = pneg %p105
        %p240 = pneg %p102
        %p241 = pneg %p126
        %p242 = pneg %p123
        %p243 = pneg %p154
        %p244 = pneg %p151
        %s245 = sand.u32 %s141, 1
        %s246 = scalar_lea.sflag [#allocation5], %s245
        %s247 = sand.u32 %s141, 1
        %s248 = smul.addr %s247, 64
        %s249 = scalar_lea.vmem [#allocation6], %s248
        %p250 = scmp.lt.s32.totalorder %s27, 1
        %s251 = scalar_select %p250, %s27, 1
        %s252 = smul.addr %s251, 4
        %s253 = smul.addr %s252, 8
        %s254 = scalar_lea.vmem %s1, %s253
        %v255 = vld [vmem:[%s220] sm:$0xff]
        %v256 = vld [vmem:[%s220 + $0x8] sm:$0xff]
        %v257 = vld [vmem:[%s220 + $0x10] sm:$0xff]
        %v258 = vld [vmem:[%s220 + $0x18] sm:$0xff]
        %v259 = vld [vmem:[%s254] sm:$0xff]
        %v260 = vld [vmem:[%s254 + $0x8] sm:$0xff]
        %v261 = vld [vmem:[%s254 + $0x10] sm:$0xff]
        %v262 = vld [vmem:[%s254 + $0x18] sm:$0xff]
        %v263 = vld [vmem:[%s2] sm:$0xff]
        %v264 = vld [vmem:[%s2 + $0x8] sm:$0xff]
        %v265 = vld [vmem:[%s2 + $0x10] sm:$0xff]
        %v266 = vld [vmem:[%s2 + $0x18] sm:$0xff]
        %268 = vset.pattern.permute.xlu0 0
        %269 = vperm.xlu0 %268, %v263
        %v270 = vpop.permute.xlu0 %269
        %273 = vset.pattern.permute.xlu0 0
        %274 = vperm.xlu0 %273, %v264
        %v275 = vpop.permute.xlu0 %274
        %278 = vset.pattern.permute.xlu0 0
        %279 = vperm.xlu0 %278, %v265
        %v280 = vpop.permute.xlu0 %279
        %283 = vset.pattern.permute.xlu0 0
        %284 = vperm.xlu0 %283, %v266
        %v285 = vpop.permute.xlu0 %284
        %v287 = vmul.f32 %v255, %v270
        %v288 = vmul.f32 %v256, %v275
        %v289 = vmul.f32 %v257, %v280
        %v290 = vmul.f32 %v258, %v285
        %v291 = vadd.f32 %v287, %v288
        %v292 = vadd.f32 %v291, %v289
        %v293 = vadd.f32 %v292, %v290
        %v294 = vrot.slane %v293, 4
        %v295 = vadd.f32 %v293, %v294
        %v296 = vrot.slane %v295, 2
        %v297 = vadd.f32 %v295, %v296
        %v298 = vrot.slane %v297, 1
        %v299 = vadd.f32 %v297, %v298
        %v300 = vld [vmem:[#allocation2] sm:$0x1]
        %302 = vset.pattern.permute.xlu0 0
        %303 = vperm.xlu0 %302, %v300
        %v304 = vpop.permute.xlu0 %303
        %v306 = vlaneseq
        %v307 = vshrl.u32 %v306, 7
        %v308 = vsub.s32 0, %v307
        %v309 = vrot.slane %v304, %v308
        %v310 = vadd.f32 %v299, %v309
        %v311 = vxor.u32 %v310, 2147483648
        %v312 = vmul.f32 %v311, 1.442695
        %v313 = vpow.pop %v312
        %v314 = vadd.f32 %v313, 1.0
        %v315 = vrcp.pop %v314
        %v316 = vmul.f32 1.0, %v315
        %318 = vset.pattern.permute.xlu0 0
        %319 = vperm.xlu0 %318, %v259
        %v320 = vpop.permute.xlu0 %319
        %323 = vset.pattern.permute.xlu0 0
        %324 = vperm.xlu0 %323, %v260
        %v325 = vpop.permute.xlu0 %324
        %328 = vset.pattern.permute.xlu0 0
        %329 = vperm.xlu0 %328, %v261
        %v330 = vpop.permute.xlu0 %329
        %333 = vset.pattern.permute.xlu0 0
        %334 = vperm.xlu0 %333, %v262
        %v335 = vpop.permute.xlu0 %334
        %v337 = vmul.f32 %v255, %v320
        %v338 = vmul.f32 %v256, %v325
        %v339 = vmul.f32 %v257, %v330
        %v340 = vmul.f32 %v258, %v335
        %341 = vst [vmem:[%s249] sm:$0xff] %v337
        %342 = vst [vmem:[%s249 + $0x8] sm:$0xff] %v338
        %343 = vst [vmem:[%s249 + $0x10] sm:$0xff] %v339
        %344 = vst [vmem:[%s249 + $0x18] sm:$0xff] %v340
        %v345 = vmul.f32 %v255, %v316
        %v346 = vmul.f32 %v256, %v316
        %v347 = vmul.f32 %v257, %v316
        %v348 = vmul.f32 %v258, %v316
        %s349 = scalar_lea.vmem %s249, 32 [#allocation6]
        %350 = vst [vmem:[%s349] sm:$0xff] %v345
        %351 = vst [vmem:[%s349 + $0x8] sm:$0xff] %v346
        %352 = vst [vmem:[%s349 + $0x10] sm:$0xff] %v347
        %353 = vst [vmem:[%s349 + $0x18] sm:$0xff] %v348
        %s354 = sand.u32 %s141, 1
        %s355 = scalar_lea.sflag [#allocation5], %s354
        %s356 = sand.u32 %s141, 1
        %s357 = smul.addr %s356, 64
        %s358 = scalar_lea.vmem [#allocation6], %s357
        // Predicated region
        $region41: #{tpu_custom_call.1} parent=35 // pred_check
          %p359 = pneg %p151
        $region42: #{tpu_custom_call.1} parent=35 // pred_check_branch
          %361 = sbr.rel (%p359) target = $region44
        $region43: #{tpu_custom_call.1} parent=35 // pred_region
          %s363 = ssub.s32 1024, 1024
          %364 = vsyncadd %s355, %s363
          %s365 = smul.addr %s27, 16
          %s366 = sadd.s32 %s28, %s365
          %s367 = smul.addr %s366, 128
          %s368 = scalar_lea.hbm %s4, %s367
          %s369 = sshll.u32 %s358, 4
          %s370 = int_to_ptr.vmem [resolvable:$true] %s369
          %375 = dma.vmem_to_hbm [thread:$0]  %s370, 1024, %s368, %s355, 128, 256, 8
        $region44: #{tpu_custom_call.1} parent=35 // pred_fallthru
          _
      $region36: #{tpu_custom_call.1} parent=5 // pred_fallthru
        _
      %p376 = scmp.le.s32.totalorder 2, %s18
      // Predicated region
      $region45: #{tpu_custom_call.1} parent=5 // pred_check
        %p377 = pneg %p376
      $region46: #{tpu_custom_call.1} parent=5 // pred_check_branch
        %379 = sbr.rel (%p377) target = $region48
      $region47: #{tpu_custom_call.1} parent=5 // pred_region
        %s380 = ssub.s32 %s18, 2
        // Predicated region
        $region49: #{tpu_custom_call.1} parent=47 // pred_check
          %p381 = pneg %p157
        $region50: #{tpu_custom_call.1} parent=47 // pred_check_branch
          %383 = sbr.rel (%p381) target = $region52
        $region51: #{tpu_custom_call.1} parent=47 // pred_region
          %s384 = sand.u32 %s142, 1
          %s385 = scalar_lea.sflag [#allocation5], %s384
          %s386 = sand.u32 %s142, 1
          %s387 = smul.addr %s386, 64
          %s388 = scalar_lea.vmem [#allocation6], %s387
          %389 = dma.done %s385, 1024
        $region52: #{tpu_custom_call.1} parent=47 // pred_fallthru
          _
      $region48: #{tpu_custom_call.1} parent=5 // pred_fallthru
        _
    $region6: #{tpu_custom_call.1} parent=1 // loop_footer
      %s22 = sadd.s32 1, %s18
    $region7: #{tpu_custom_call.1} parent=1 // loop_footer_branch
      %17 = sbr.rel target = $region3
    $region8: #{tpu_custom_call.1} parent=1 // loop_exit
      _
    %390 = vsyncpa [#allocation4], 1
    %s391 = scalar_lea.sflag [#allocation4], 1
    %392 = vsyncpa %s391, 1
    %393 = vsyncpa [#allocation5], 1
    %s394 = scalar_lea.sflag [#allocation5], 1
    %395 = vsyncpa %s394, 1

</llo_original>
